<compile_context>
chip_gen: v6e
topology: v6e:2x2x1
jax: 0.10.0
libtpu: 0.0.40
codegen_flags: <defaults>
</compile_context>

<pallas_src>
import jax
import jax.numpy as jnp
from jax import lax
from jax.experimental import pallas as pl
from jax.experimental.pallas import tpu as pltpu


def _outconv_kernel(w_ref, x_ref, b_ref, o_ref):
    # w_ref: (C_out, C_in)  x_ref: (C_in, tn)  b_ref: (C_out, 1) f32  o_ref: (C_out, tn)
    acc = jnp.dot(
        w_ref[...],
        x_ref[...],
        preferred_element_type=jnp.float32,
        precision=lax.Precision.HIGHEST,
    )
    o_ref[...] = (acc + b_ref[...]).astype(o_ref.dtype)


def _round_up(a, b):
    return ((a + b - 1) // b) * b


def _vmem_capacity_bytes():
    try:
        return int(pltpu.get_tpu_info().vmem_capacity_bytes)
    except Exception:
        return 64 << 20  # conservative fallback: v7x per-TC VMEM


def _select_tile(HW, C_in, C_out, in_bytes, out_bytes, N, tn_target):
    """Pick the lane (spatial) tile width."""
    if HW < 128:
        # Full spatial extent equals the array dim -> legal block, single tile.
        return HW

    # Keep block <= array extent and a multiple of 128 (unmasked interior stores).
    tn_cap = (HW // 128) * 128
    tn = min(tn_target, tn_cap)

    # VMEM budget: double-buffered x + out tiles must stay well under half of
    # physical VMEM (v7x: 64 MiB/TC; v5e default scoped limit is only 16 MiB).
    vmem_budget = _vmem_capacity_bytes() // 2 - (4 << 20)
    per_lane = 2 * (C_in * in_bytes + C_out * out_bytes)  # double-buffered bytes/lane
    tn_vmem = max(128, (max(vmem_budget, 1 << 20) // max(per_lane, 1)) // 128 * 128)
    tn = min(tn, tn_vmem)
    tn = max(128, (tn // 128) * 128)

    # Megacore load balance (v7x has 2 TCs): aim for >= 4 parallel grid steps.
    min_steps = 4
    if N * pl.cdiv(HW, tn) < min_steps:
        tiles_needed = -(-min_steps // N)  # ceil(min_steps / N)
        tn_split = _round_up(pl.cdiv(HW, tiles_needed), 128)
        tn = max(128, min(tn, tn_split))
    return tn


def outconv(x_nchw, weight, bias, *, tn_target=4096):
    """1x1 Conv2d forward (OutConv).

    x_nchw : (N, C_in, H, W)
    weight : (C_out, C_in, 1, 1)   (PyTorch layout)
    bias   : (C_out,)
    returns: (N, C_out, H, W)
    """
    N, C_in, H, W = x_nchw.shape
    C_out = weight.shape[0]
    HW = H * W

    # Free reshape (row-major): contraction dim (C_in) stays adjacent and the
    # contiguous spatial axis HW maps to lanes.  No transposes, no padding.
    x_flat = x_nchw.reshape(N, C_in, HW)
    w_mat = weight.reshape(C_out, C_in)
    b_mat = bias.reshape(C_out, 1).astype(jnp.float32)

    out_dtype = x_nchw.dtype
    in_bytes = jnp.dtype(x_nchw.dtype).itemsize
    out_bytes = jnp.dtype(out_dtype).itemsize

    tn = _select_tile(HW, C_in, C_out, in_bytes, out_bytes, N, tn_target)
    n_tiles = pl.cdiv(HW, tn)  # ragged last tile: Pallas masks the OOB output store
    grid = (N, n_tiles)

    # VMEM footprint: double-buffered x and out tiles + resident weight/bias.
    footprint = (
        2 * tn * (C_in * in_bytes + C_out * out_bytes)
        + C_out * C_in * jnp.dtype(w_mat.dtype).itemsize
        + C_out * 4
    )
    vmem_limit = int(
        min(_vmem_capacity_bytes() // 2, max(2 * footprint + (2 << 20), 16 << 20))
    )

    cost = pl.CostEstimate(
        flops=2 * N * C_out * C_in * HW,
        transcendentals=0,
        bytes_accessed=(
            N * HW * (C_in * in_bytes + C_out * out_bytes)
            + C_out * C_in * jnp.dtype(w_mat.dtype).itemsize
            + C_out * 4
        ),
    )

    out_flat = pl.pallas_call(
        _outconv_kernel,
        out_shape=jax.ShapeDtypeStruct((N, C_out, HW), out_dtype),
        grid_spec=pltpu.PrefetchScalarGridSpec(
            num_scalar_prefetch=0,
            grid=grid,
            in_specs=[
                # weight: whole (C_out, C_in), same block every step (resident)
                pl.BlockSpec((C_out, C_in), lambda n, j: (0, 0)),
                # activations: (C_in, tn) slab of batch n, spatial tile j
                # (leading None squeezes the batch dim out of the kernel Ref)
                pl.BlockSpec((None, C_in, tn), lambda n, j: (n, 0, j)),
                # bias: whole (C_out, 1) in f32
                pl.BlockSpec((C_out, 1), lambda n, j: (0, 0)),
            ],
            out_specs=pl.BlockSpec((None, C_out, tn), lambda n, j: (n, 0, j)),
        ),
        compiler_params=pltpu.CompilerParams(
            dimension_semantics=("parallel", "parallel"),
            vmem_limit_bytes=vmem_limit,
        ),
        cost_estimate=cost,
    )(w_mat, x_flat, b_mat)

    return out_flat.reshape(N, C_out, H, W)


def _reference(x, weight, bias):
    C_out, C_in = weight.shape[0], weight.shape[1]
    return (
        jnp.einsum("nchw,oc->nohw", x, weight.reshape(C_out, C_in))
        + bias[None, :, None, None]
    )


if __name__ == "__main__":
    key = jax.random.PRNGKey(0)
    k_x, k_w, k_b, k_x2 = jax.random.split(key, 4)

    N, C_in, C_out, H, W = 2, 4, 3, 16, 16

    x = jax.random.normal(k_x, (N, C_in, H, W), dtype=jnp.float32)
    # Deterministic synthetic params matching nn.Conv2d(C_in, C_out, 1) shapes.
    weight = jax.random.normal(k_w, (C_out, C_in, 1, 1), dtype=jnp.float32) * 0.1
    bias = jax.random.normal(k_b, (C_out,), dtype=jnp.float32) * 0.1

    y = jax.block_until_ready(outconv(x, weight, bias))
    y_ref = _reference(x, weight, bias)
    assert y.shape == (N, C_out, H, W)
    assert jnp.allclose(y, y_ref, atol=1e-5, rtol=1e-5)

    # Ragged spatial extent (HW not a multiple of the tile): exercises the
    # masked last-tile store path (no wrapper padding anywhere).
    H2, W2 = 11, 13  # HW = 143
    x2 = jax.random.normal(k_x2, (1, C_in, H2, W2), dtype=jnp.float32)
    y2 = jax.block_until_ready(outconv(x2, weight, bias, tn_target=128))
    y2_ref = _reference(x2, weight, bias)
    assert y2.shape == (1, C_out, H2, W2)
    assert jnp.allclose(y2, y2_ref, atol=1e-5, rtol=1e-5)

    print("KERNEL_OK")
</pallas_src>

<mosaic_0001>
module attributes {stable_mosaic.version = 11 : i64} {
  func.func @_outconv_kernel(%arg0: i32, %arg1: i32, %arg2: memref<3x4xf32, #tpu.memory_space<vmem>>, %arg3: memref<1x4x128xf32, #tpu.memory_space<vmem>>, %arg4: memref<3x1xf32, #tpu.memory_space<vmem>>, %arg5: memref<1x3x128xf32, #tpu.memory_space<vmem>>) attributes {dimension_semantics = [#tpu.dimension_semantics<parallel>, #tpu.dimension_semantics<parallel>], iteration_bounds = array<i64: 2, 2>, scalar_prefetch = 0 : i64, scratch_operands = 0 : i64, tpu.core_type = #tpu.core_type<tc>, window_params = [{pipeline_mode = #tpu.pipeline_mode<synchronous>, transform_indices = @transform_0, window_bounds = array<i64: 3, 4>}, {transform_indices = @transform_1, window_bounds = array<i64: 1, 4, 128>}, {pipeline_mode = #tpu.pipeline_mode<synchronous>, transform_indices = @transform_2, window_bounds = array<i64: 3, 1>}, {transform_indices = @transform_3, window_bounds = array<i64: 1, 3, 128>}]} {
    %c0 = arith.constant 0 : index
    %c0_0 = arith.constant 0 : index
    %0 = vector.load %arg2[%c0, %c0_0] : memref<3x4xf32, #tpu.memory_space<vmem>>, vector<3x4xf32>
    %c0_1 = arith.constant 0 : index
    %c0_2 = arith.constant 0 : index
    %c0_3 = arith.constant 0 : index
    %1 = vector.load %arg3[%c0_1, %c0_2, %c0_3] : memref<1x4x128xf32, #tpu.memory_space<vmem>>, vector<1x4x128xf32>
    %2 = vector.shape_cast %1 : vector<1x4x128xf32> to vector<4x128xf32>
    %cst = arith.constant dense<0.000000e+00> : vector<3x128xf32>
    %3 = tpu.matmul %0, %2, %cst {dimension_numbers = #tpu.dot_dimension_numbers<[1], [0], [0], [1], [0, 0, 1, 1], [], []>, precision = #tpu.contract_precision<fp32>} : vector<3x4xf32>, vector<4x128xf32>, vector<3x128xf32> -> vector<3x128xf32>
    %c0_4 = arith.constant 0 : index
    %c0_5 = arith.constant 0 : index
    %4 = vector.load %arg4[%c0_4, %c0_5] : memref<3x1xf32, #tpu.memory_space<vmem>>, vector<3x1xf32>
    %5 = vector.broadcast %4 : vector<3x1xf32> to vector<3x128xf32>
    %6 = arith.addf %3, %5 : vector<3x128xf32>
    %c0_6 = arith.constant 0 : index
    %c0_7 = arith.constant 0 : index
    %c0_8 = arith.constant 0 : index
    %7 = vector.load %arg5[%c0_6, %c0_7, %c0_8] : memref<1x3x128xf32, #tpu.memory_space<vmem>>, vector<1x3x128xf32>
    %8 = vector.shape_cast %7 : vector<1x3x128xf32> to vector<3x128xf32>
    %9 = vector.shape_cast %6 : vector<3x128xf32> to vector<1x3x128xf32>
    tpu.vector_store %arg5[%c0_6, %c0_7, %c0_8], %9 {strides = array<i32>} : memref<1x3x128xf32, #tpu.memory_space<vmem>>, vector<1x3x128xf32>,
    return
  }
  func.func @transform_0(%arg0: i32, %arg1: i32) -> (i32, i32) {
    %c0_i32 = arith.constant 0 : i32
    %c0_i32_0 = arith.constant 0 : i32
    %c0_i32_1 = arith.constant 0 : i32
    return %c0_i32, %c0_i32_0 : i32, i32
  }
  func.func @transform_1(%arg0: i32, %arg1: i32) -> (i32, i32, i32) {
    %c0_i32 = arith.constant 0 : i32
    %c0_i32_0 = arith.constant 0 : i32
    return %arg0, %c0_i32, %arg1 : i32, i32, i32
  }
  func.func @transform_2(%arg0: i32, %arg1: i32) -> (i32, i32) {
    %c0_i32 = arith.constant 0 : i32
    %c0_i32_0 = arith.constant 0 : i32
    %c0_i32_1 = arith.constant 0 : i32
    return %c0_i32, %c0_i32_0 : i32, i32
  }
  func.func @transform_3(%arg0: i32, %arg1: i32) -> (i32, i32, i32) {
    %c0_i32 = arith.constant 0 : i32
    %c0_i32_0 = arith.constant 0 : i32
    return %arg0, %c0_i32, %arg1 : i32, i32, i32
  }
}

</mosaic_0001>

<llo_original>
// kernel: tpu_custom_call.1
$region0: #{tpu_custom_call.1}
  #allocation0 [shape = 'u32[]', space=smem, size = 0x4, offset = 0x4, fixed_abs, tag = 'smem constant byte address 0x4 - core index']
  #allocation1 [shape = 'u32[144,128]{1,0:T(1,128)}', space=vmem, size = 0x12000, scoped, tag = 'internal scratch']
  %s0 = inlined_call_operand.vmem [shape: f32[3,4], index: 0, kind: input, shape index: {}]
  %s1 = inlined_call_operand.hbm [shape: f32[2,4,256], index: 1, kind: input, shape index: {}]
  %s2 = inlined_call_operand.vmem [shape: f32[3,1], index: 2, kind: input, shape index: {}]
  %s3 = inlined_call_operand.vmem [shape: f32[2,3,256], index: 3, kind: output, shape index: {}]
  %s4 = sld [smem:[#allocation0]]
  $region49: #{tpu_custom_call.1} parent=0
    _
  %s6 = ssub.s32 1, %s4
  %s7 = scalar_select 0, %s6, %s4
  $region1: #{tpu_custom_call.1} parent=0
    #allocation2 [shape = 'u8[4096]{0}', space=vmem, size = 0x1000, scoped, tag = 'input window, operand 1']
    #allocation3 [shape = 's32[2]{0}', space=sflag, size = 0x8, scoped, tag = 'scoped memory for tpu_custom_call.1']
    %8 = vsyncpa [#allocation3], 0
    %s9 = scalar_lea.sflag [#allocation3], 1
    %10 = vsyncpa %s9, 0
    loop: start=0, step=1, limit=6
    $region2: #{tpu_custom_call.1} parent=1 // loop_pre_header
      _
    $region3: #{tpu_custom_call.1} parent=1 // loop_header
      %s12 = sphi 0, %s16
      %p13 = scmp.ge.s32.totalorder %s12, 6
      %s19 = sphi 0, %s31
      %s20 = sphi 0, %s27
      %s21 = sphi 0, %s19
      %s22 = sphi 0, %s20
      %s23 = sphi 0, %s21
      %s24 = sphi 0, %s22
      %s32 = sphi 0, %s32
      %s34 = sphi 0, %s32
      %s35 = sphi 0, %s34
      %s49 = sphi 0, %s35
      %s57 = sphi 0, %s59
      %s60 = sphi 0, %s57
      %s61 = sphi 0, %s60
      %s77 = sphi 0, %s61
      %s81 = sphi 0, %s81
      %s83 = sphi 0, %s81
      %s84 = sphi 0, %s83
      %s98 = sphi 0, %s84
      %s106 = sphi 0, %s108
      %s109 = sphi 0, %s106
      %s110 = sphi 0, %s109
      %s126 = sphi 0, %s110
    $region4: #{tpu_custom_call.1} parent=1 // loop_header_branch
      %15 = sbr.rel (%p13) target = $region8
    $region5: #{tpu_custom_call.1} parent=1 // loop_body
      %s17 = ssub.s32 %s12, 1
      %s18 = ssub.s32 %s12, 2
      %s25 = sadd.s32 1, %s20
      %p26 = scmp.ge.s32.totalorder %s25, 2
      %s27 = scalar_select %p26, 0, %s25
      %s28 = sadd.s32 1, %s19
      %s29 = scalar_select %p26, %s28, %s19
      %p30 = scmp.ge.s32.totalorder %s29, 2
      %s31 = scalar_select %p30, 0, %s29
      %s33 = sadd.s32 %s32, 1
      %p36 = scmp.eq.s32.totalorder %s12, 3
      %p37 = scmp.ne.s32.totalorder %s32, %s34
      %p38 = scmp.eq.s32.totalorder %s12, 0
      %p39 = por %p37, %p38
      %p40 = scmp.ne.s32.totalorder %s32, %s34
      %p41 = scmp.eq.s32.totalorder %s17, 3
      %p42 = por %p40, %p41
      %p43 = scmp.ne.s32.totalorder %s34, %s35
      %p44 = scmp.eq.s32.totalorder %s17, 0
      %p45 = por %p43, %p44
      %p46 = scmp.ne.s32.totalorder %s34, %s35
      %p47 = scmp.eq.s32.totalorder %s18, 3
      %p48 = por %p46, %p47
      %p50 = scmp.ne.s32.totalorder %s35, %s49
      %p51 = scmp.eq.s32.totalorder %s18, 0
      %p52 = por %p50, %p51
      %s53 = ssub.s32 %s19, %s31
      %s54 = ssub.s32 %s20, %s27
      %s55 = sor.u32 %s53, %s54
      %p56 = scmp.eq.s32.totalorder %s55, 0
      %s58 = sadd.s32 %s57, 1
      %s59 = scalar_select %p56, %s57, %s58
      %p62 = pneg %p56
      %p63 = scmp.eq.s32.totalorder %s12, 3
      %p64 = por %p62, %p63
      %p65 = scmp.ne.s32.totalorder %s57, %s60
      %p66 = scmp.eq.s32.totalorder %s12, 0
      %p67 = por %p65, %p66
      %p68 = scmp.ne.s32.totalorder %s57, %s60
      %p69 = scmp.eq.s32.totalorder %s17, 3
      %p70 = por %p68, %p69
      %p71 = scmp.ne.s32.totalorder %s60, %s61
      %p72 = scmp.eq.s32.totalorder %s17, 0
      %p73 = por %p71, %p72
      %p74 = scmp.ne.s32.totalorder %s60, %s61
      %p75 = scmp.eq.s32.totalorder %s18, 3
      %p76 = por %p74, %p75
      %p78 = scmp.ne.s32.totalorder %s61, %s77
      %p79 = scmp.eq.s32.totalorder %s18, 0
      %p80 = por %p78, %p79
      %s82 = sadd.s32 %s81, 1
      %p85 = scmp.eq.s32.totalorder %s12, 3
      %p86 = scmp.ne.s32.totalorder %s81, %s83
      %p87 = scmp.eq.s32.totalorder %s12, 0
      %p88 = por %p86, %p87
      %p89 = scmp.ne.s32.totalorder %s81, %s83
      %p90 = scmp.eq.s32.totalorder %s17, 3
      %p91 = por %p89, %p90
      %p92 = scmp.ne.s32.totalorder %s83, %s84
      %p93 = scmp.eq.s32.totalorder %s17, 0
      %p94 = por %p92, %p93
      %p95 = scmp.ne.s32.totalorder %s83, %s84
      %p96 = scmp.eq.s32.totalorder %s18, 3
      %p97 = por %p95, %p96
      %p99 = scmp.ne.s32.totalorder %s84, %s98
      %p100 = scmp.eq.s32.totalorder %s18, 0
      %p101 = por %p99, %p100
      %s102 = ssub.s32 %s19, %s31
      %s103 = ssub.s32 %s20, %s27
      %s104 = sor.u32 %s102, %s103
      %p105 = scmp.eq.s32.totalorder %s104, 0
      %s107 = sadd.s32 %s106, 1
      %s108 = scalar_select %p105, %s106, %s107
      %p111 = pneg %p105
      %p112 = scmp.eq.s32.totalorder %s12, 3
      %p113 = por %p111, %p112
      %p114 = scmp.ne.s32.totalorder %s106, %s109
      %p115 = scmp.eq.s32.totalorder %s12, 0
      %p116 = por %p114, %p115
      %p117 = scmp.ne.s32.totalorder %s106, %s109
      %p118 = scmp.eq.s32.totalorder %s17, 3
      %p119 = por %p117, %p118
      %p120 = scmp.ne.s32.totalorder %s109, %s110
      %p121 = scmp.eq.s32.totalorder %s17, 0
      %p122 = por %p120, %p121
      %p123 = scmp.ne.s32.totalorder %s109, %s110
      %p124 = scmp.eq.s32.totalorder %s18, 3
      %p125 = por %p123, %p124
      %p127 = scmp.ne.s32.totalorder %s110, %s126
      %p128 = scmp.eq.s32.totalorder %s18, 0
      %p129 = por %p127, %p128
      %p130 = scmp.le.s32.totalorder 1, %s12
      %p131 = scmp.lt.s32.totalorder %s12, 5
      %p132 = pnand %p130, %p131
      %p133 = pneg %p132
      // Predicated region
      $region9: #{tpu_custom_call.1} parent=5 // pred_check
        _
      $region10: #{tpu_custom_call.1} parent=5 // pred_check_branch
        %135 = sbr.rel (%p132) target = $region12
      $region11: #{tpu_custom_call.1} parent=5 // pred_region
        %s136 = ssub.s32 %s12, 1
        // Predicated region
        $region13: #{tpu_custom_call.1} parent=11 // pred_check
          %p137 = pneg %p45
        $region14: #{tpu_custom_call.1} parent=11 // pred_check_branch
          %139 = sbr.rel (%p137) target = $region16
        $region15: #{tpu_custom_call.1} parent=11 // pred_region
          _
        $region16: #{tpu_custom_call.1} parent=11 // pred_fallthru
          _
        // Predicated region
        $region17: #{tpu_custom_call.1} parent=11 // pred_check
          %p140 = pneg %p94
        $region18: #{tpu_custom_call.1} parent=11 // pred_check_branch
          %142 = sbr.rel (%p140) target = $region20
        $region19: #{tpu_custom_call.1} parent=11 // pred_region
          _
        $region20: #{tpu_custom_call.1} parent=11 // pred_fallthru
          _
      $region12: #{tpu_custom_call.1} parent=5 // pred_fallthru
        _
      %p143 = scmp.lt.s32.totalorder %s12, 4
      // Predicated region
      $region21: #{tpu_custom_call.1} parent=5 // pred_check
        %p144 = pneg %p143
      $region22: #{tpu_custom_call.1} parent=5 // pred_check_branch
        %146 = sbr.rel (%p144) target = $region24
      $region23: #{tpu_custom_call.1} parent=5 // pred_region
        // Predicated region
        $region25: #{tpu_custom_call.1} parent=23 // pred_check
          %p147 = pneg %p67
        $region26: #{tpu_custom_call.1} parent=23 // pred_check_branch
          %149 = sbr.rel (%p147) target = $region28
        $region27: #{tpu_custom_call.1} parent=23 // pred_region
          %s150 = sand.u32 %s57, 1
          %s151 = scalar_lea.sflag [#allocation3], %s150
          %s152 = sand.u32 %s57, 1
          %s153 = smul.addr %s152, 4
          %s154 = scalar_lea.vmem [#allocation2], %s153
          %s156 = ssub.s32 64, 64
          %157 = vsyncadd %s151, %s156
          %s158 = smul.addr %s19, 2
          %s159 = sadd.s32 %s20, %s158
          %s160 = smul.addr %s159, 64
          %s161 = scalar_lea.hbm %s1, %s160
          %s163 = sshll.u32 %s154, 4
          %s164 = int_to_ptr.vmem [resolvable:$true] %s163
          %166 = dma.hbm_to_vmem [thread:$0]  %s161, 64, %s164, %s151
        $region28: #{tpu_custom_call.1} parent=23 // pred_fallthru
          _
      $region24: #{tpu_custom_call.1} parent=5 // pred_fallthru
        _
      %p167 = scmp.le.s32.totalorder 1, %s12
      %p168 = scmp.lt.s32.totalorder %s12, 5
      %p169 = pnand %p167, %p168
      %p170 = pneg %p169
      // Predicated region
      $region29: #{tpu_custom_call.1} parent=5 // pred_check
        _
      $region30: #{tpu_custom_call.1} parent=5 // pred_check_branch
        %172 = sbr.rel (%p169) target = $region32
      $region31: #{tpu_custom_call.1} parent=5 // pred_region
        %s173 = ssub.s32 %s12, 1
        %s174 = sand.u32 %s60, 1
        %s175 = scalar_lea.sflag [#allocation3], %s174
        %s176 = sand.u32 %s60, 1
        %s177 = smul.addr %s176, 4
        %s178 = scalar_lea.vmem [#allocation2], %s177
        // Predicated region
        $region33: #{tpu_custom_call.1} parent=31 // pred_check
          %p179 = pneg %p73
        $region34: #{tpu_custom_call.1} parent=31 // pred_check_branch
          %181 = sbr.rel (%p179) target = $region36
        $region35: #{tpu_custom_call.1} parent=31 // pred_region
          %182 = dma.done %s175, 64
        $region36: #{tpu_custom_call.1} parent=31 // pred_fallthru
          _
        %p183 = pneg %p45
        %p184 = pneg %p42
        %s185 = sand.u32 %s60, 1
        %s186 = scalar_lea.sflag [#allocation3], %s185
        %s187 = sand.u32 %s60, 1
        %s188 = smul.addr %s187, 4
        %s189 = scalar_lea.vmem [#allocation2], %s188
        %p190 = pneg %p73
        %p191 = pneg %p70
        %p192 = pneg %p94
        %p193 = pneg %p91
        %p194 = pneg %p122
        %p195 = pneg %p119
        %p196 = scmp.lt.s32.totalorder %s21, 1
        %s197 = scalar_select %p196, %s21, 1
        %p198 = scmp.lt.s32.totalorder %s22, 1
        %s199 = scalar_select %p198, %s22, 1
        %s200 = smul.addr %s197, 2
        %s201 = sadd.s32 %s199, %s200
        %s202 = smul.addr %s201, 4
        %s203 = scalar_lea.vmem %s3, %s202
        %p204 = scmp.lt.s32.totalorder %s21, 1
        %s205 = scalar_select %p204, %s21, 1
        %p206 = scmp.lt.s32.totalorder %s22, 1
        %s207 = scalar_select %p206, %s22, 1
        %s208 = smul.addr %s205, 2
        %s209 = sadd.s32 %s207, %s208
        %s210 = smul.addr %s209, 4
        %s211 = scalar_lea.vmem %s3, %s210
        %v212 = vld [vmem:[%s0] sm:$0x7]
        %v213 = vld [vmem:[%s178] sm:$0xf]
        %v214 = vld [vmem:[%s2] sm:$0x7]
        %216 = vset.pattern.permute.xlu0 0
        %217 = vperm.xlu0 %216, %v214
        %v218 = vpop.permute.xlu0 %217
        %vm220 = vcmask 31744
        %v222 = vsel %vm220, %v212, 0
        %vm224 = vcmask 1043456
        %v226 = vsel %vm224, %v213, 0
        %228 = vmatprep.subr.mxu0 0.0
        %229 = vmatpush1.msra.mxu0 0.0
        %230 = vmatprep.subr.mxu0 0.0
        %231 = vmatpush1.msra.mxu0 0.0
        %232 = vmatprep.subr.mxu0 0.0
        %233 = vmatpush1.msra.mxu0 0.0
        %234 = vmatprep.subr.mxu0 0.0
        %235 = vmatpush1.msra.mxu0 0.0
        %236 = vmatprep.subr.mxu0 0.0
        %237 = vmatpush1.msra.mxu0 0.0
        %238 = vmatprep.subr.mxu0 0.0
        %239 = vmatpush1.msra.mxu0 0.0
        %240 = vmatprep.subr.mxu0 0.0
        %241 = vmatpush1.msra.mxu0 0.0
        %242 = vmatprep.subr.mxu0 0.0
        %243 = vmatpush1.msra.mxu0 0.0
        %244 = vmatprep.subr.mxu0 0.0
        %245 = vmatpush1.msra.mxu0 0.0
        %246 = vmatprep.subr.mxu0 0.0
        %247 = vmatpush1.msra.mxu0 0.0
        %248 = vmatprep.subr.mxu0 0.0
        %249 = vmatpush1.msra.mxu0 0.0
        %250 = vmatprep.subr.mxu0 0.0
        %251 = vmatpush1.msra.mxu0 0.0
        %252 = vmatprep.subr.mxu0 0.0
        %253 = vmatpush1.msra.mxu0 0.0
        %254 = vmatprep.subr.mxu0 0.0
        %255 = vmatpush1.msra.mxu0 0.0
        %256 = vmatprep.subr.mxu0 0.0
        %257 = vmatpush1.msra.mxu0 0.0
        %258 = vmatprep.subr.mxu0 0.0
        %v259 = vand.u32 %v226, 4294901760
        %260 = vmatpush1.msra.mxu0 %v259
        %261 = vmatprep.subr.mxu0 0.0
        %262 = vmatpush2.msra.mxu0 0.0
        %263 = vmatprep.subr.mxu0 0.0
        %264 = vmatpush2.msra.mxu0 0.0
        %265 = vmatprep.subr.mxu0 0.0
        %266 = vmatpush2.msra.mxu0 0.0
        %267 = vmatprep.subr.mxu0 0.0
        %268 = vmatpush2.msra.mxu0 0.0
        %269 = vmatprep.subr.mxu0 0.0
        %270 = vmatpush2.msra.mxu0 0.0
        %271 = vmatprep.subr.mxu0 0.0
        %272 = vmatpush2.msra.mxu0 0.0
        %273 = vmatprep.subr.mxu0 0.0
        %274 = vmatpush2.msra.mxu0 0.0
        %275 = vmatprep.subr.mxu0 0.0
        %276 = vmatpush2.msra.mxu0 0.0
        %277 = vmatprep.subr.mxu0 0.0
        %278 = vmatpush2.msra.mxu0 0.0
        %279 = vmatprep.subr.mxu0 0.0
        %280 = vmatpush2.msra.mxu0 0.0
        %281 = vmatprep.subr.mxu0 0.0
        %282 = vmatpush2.msra.mxu0 0.0
        %283 = vmatprep.subr.mxu0 0.0
        %284 = vmatpush2.msra.mxu0 0.0
        %285 = vmatprep.subr.mxu0 0.0
        %286 = vmatpush2.msra.mxu0 0.0
        %287 = vmatprep.subr.mxu0 0.0
        %288 = vmatpush2.msra.mxu0 0.0
        %289 = vmatprep.subr.mxu0 0.0
        %290 = vmatpush2.msra.mxu0 0.0
        %291 = vmatprep.subr.mxu0 0.0
        %292 = vmatpush2.msra.mxu0 0.0
        %293 = vmatprep.mubr.f32.mxu0 0.0
        %v294 = vand.u32 %v222, 4294901760
        %v295 = vsub.f32 %v222, %v294
        %v296 = vand.u32 %v295, 4294901760
        %v297 = vsub.f32 %v295, %v296
        %v298 = vand.u32 %v297, 4294901760
        %299 = vmatmul.mubr.f32.gmra.mxu0 %v298
        %v300 = vpop.f32.mrf.mxu0
        %v301 = vadd.f32 %v218, %v300
        %v302 = vpop.f32.mrf.mxu0
        %303 = vdwg.mxu0
        %304 = vmatprep.subr.mxu0 0.0
        %305 = vmatpush1.msra.mxu0 0.0
        %306 = vmatprep.subr.mxu0 0.0
        %307 = vmatpush1.msra.mxu0 0.0
        %308 = vmatprep.subr.mxu0 0.0
        %309 = vmatpush1.msra.mxu0 0.0
        %310 = vmatprep.subr.mxu0 0.0
        %311 = vmatpush1.msra.mxu0 0.0
        %312 = vmatprep.subr.mxu0 0.0
        %313 = vmatpush1.msra.mxu0 0.0
        %314 = vmatprep.subr.mxu0 0.0
        %315 = vmatpush1.msra.mxu0 0.0
        %316 = vmatprep.subr.mxu0 0.0
        %317 = vmatpush1.msra.mxu0 0.0
        %318 = vmatprep.subr.mxu0 0.0
        %319 = vmatpush1.msra.mxu0 0.0
        %320 = vmatprep.subr.mxu0 0.0
        %321 = vmatpush1.msra.mxu0 0.0
        %322 = vmatprep.subr.mxu0 0.0
        %323 = vmatpush1.msra.mxu0 0.0
        %324 = vmatprep.subr.mxu0 0.0
        %325 = vmatpush1.msra.mxu0 0.0
        %326 = vmatprep.subr.mxu0 0.0
        %327 = vmatpush1.msra.mxu0 0.0
        %328 = vmatprep.subr.mxu0 0.0
        %329 = vmatpush1.msra.mxu0 0.0
        %330 = vmatprep.subr.mxu0 0.0
        %331 = vmatpush1.msra.mxu0 0.0
        %332 = vmatprep.subr.mxu0 0.0
        %333 = vmatpush1.msra.mxu0 0.0
        %334 = vmatprep.subr.mxu0 0.0
        %v335 = vand.u32 %v226, 4294901760
        %v336 = vsub.f32 %v226, %v335
        %v337 = vand.u32 %v336, 4294901760
        %v338 = vsub.f32 %v336, %v337
        %v339 = vand.u32 %v338, 4294901760
        %340 = vmatpush1.msra.mxu0 %v339
        %341 = vmatprep.subr.mxu0 0.0
        %342 = vmatpush2.msra.mxu0 0.0
        %343 = vmatprep.subr.mxu0 0.0
        %344 = vmatpush2.msra.mxu0 0.0
        %345 = vmatprep.subr.mxu0 0.0
        %346 = vmatpush2.msra.mxu0 0.0
        %347 = vmatprep.subr.mxu0 0.0
        %348 = vmatpush2.msra.mxu0 0.0
        %349 = vmatprep.subr.mxu0 0.0
        %350 = vmatpush2.msra.mxu0 0.0
        %351 = vmatprep.subr.mxu0 0.0
        %352 = vmatpush2.msra.mxu0 0.0
        %353 = vmatprep.subr.mxu0 0.0
        %354 = vmatpush2.msra.mxu0 0.0
        %355 = vmatprep.subr.mxu0 0.0
        %356 = vmatpush2.msra.mxu0 0.0
        %357 = vmatprep.subr.mxu0 0.0
        %358 = vmatpush2.msra.mxu0 0.0
        %359 = vmatprep.subr.mxu0 0.0
        %360 = vmatpush2.msra.mxu0 0.0
        %361 = vmatprep.subr.mxu0 0.0
        %362 = vmatpush2.msra.mxu0 0.0
        %363 = vmatprep.subr.mxu0 0.0
        %364 = vmatpush2.msra.mxu0 0.0
        %365 = vmatprep.subr.mxu0 0.0
        %366 = vmatpush2.msra.mxu0 0.0
        %367 = vmatprep.subr.mxu0 0.0
        %368 = vmatpush2.msra.mxu0 0.0
        %369 = vmatprep.subr.mxu0 0.0
        %370 = vmatpush2.msra.mxu0 0.0
        %371 = vmatprep.subr.mxu0 0.0
        %372 = vmatpush2.msra.mxu0 0.0
        %373 = vmatprep.mubr.f32.mxu0 0.0
        %v374 = vand.u32 %v222, 4294901760
        %375 = vmatmul.mubr.f32.gmra.mxu0 %v374
        %v376 = vpop.f32.mrf.mxu0
        %v377 = vadd.f32 %v301, %v376
        %v378 = vpop.f32.mrf.mxu0
        %379 = vdwg.mxu0
        %380 = vmatprep.subr.mxu0 0.0
        %381 = vmatpush1.msra.mxu0 0.0
        %382 = vmatprep.subr.mxu0 0.0
        %383 = vmatpush1.msra.mxu0 0.0
        %384 = vmatprep.subr.mxu0 0.0
        %385 = vmatpush1.msra.mxu0 0.0
        %386 = vmatprep.subr.mxu0 0.0
        %387 = vmatpush1.msra.mxu0 0.0
        %388 = vmatprep.subr.mxu0 0.0
        %389 = vmatpush1.msra.mxu0 0.0
        %390 = vmatprep.subr.mxu0 0.0
        %391 = vmatpush1.msra.mxu0 0.0
        %392 = vmatprep.subr.mxu0 0.0
        %393 = vmatpush1.msra.mxu0 0.0
        %394 = vmatprep.subr.mxu0 0.0
        %395 = vmatpush1.msra.mxu0 0.0
        %396 = vmatprep.subr.mxu0 0.0
        %397 = vmatpush1.msra.mxu0 0.0
        %398 = vmatprep.subr.mxu0 0.0
        %399 = vmatpush1.msra.mxu0 0.0
        %400 = vmatprep.subr.mxu0 0.0
        %401 = vmatpush1.msra.mxu0 0.0
        %402 = vmatprep.subr.mxu0 0.0
        %403 = vmatpush1.msra.mxu0 0.0
        %404 = vmatprep.subr.mxu0 0.0
        %405 = vmatpush1.msra.mxu0 0.0
        %406 = vmatprep.subr.mxu0 0.0
        %407 = vmatpush1.msra.mxu0 0.0
        %408 = vmatprep.subr.mxu0 0.0
        %409 = vmatpush1.msra.mxu0 0.0
        %410 = vmatprep.subr.mxu0 0.0
        %v411 = vand.u32 %v226, 4294901760
        %v412 = vsub.f32 %v226, %v411
        %413 = vmatpush1.msra.mxu0 %v412
        %414 = vmatprep.subr.mxu0 0.0
        %415 = vmatpush2.msra.mxu0 0.0
        %416 = vmatprep.subr.mxu0 0.0
        %417 = vmatpush2.msra.mxu0 0.0
        %418 = vmatprep.subr.mxu0 0.0
        %419 = vmatpush2.msra.mxu0 0.0
        %420 = vmatprep.subr.mxu0 0.0
        %421 = vmatpush2.msra.mxu0 0.0
        %422 = vmatprep.subr.mxu0 0.0
        %423 = vmatpush2.msra.mxu0 0.0
        %424 = vmatprep.subr.mxu0 0.0
        %425 = vmatpush2.msra.mxu0 0.0
        %426 = vmatprep.subr.mxu0 0.0
        %427 = vmatpush2.msra.mxu0 0.0
        %428 = vmatprep.subr.mxu0 0.0
        %429 = vmatpush2.msra.mxu0 0.0
        %430 = vmatprep.subr.mxu0 0.0
        %431 = vmatpush2.msra.mxu0 0.0
        %432 = vmatprep.subr.mxu0 0.0
        %433 = vmatpush2.msra.mxu0 0.0
        %434 = vmatprep.subr.mxu0 0.0
        %435 = vmatpush2.msra.mxu0 0.0
        %436 = vmatprep.subr.mxu0 0.0
        %437 = vmatpush2.msra.mxu0 0.0
        %438 = vmatprep.subr.mxu0 0.0
        %439 = vmatpush2.msra.mxu0 0.0
        %440 = vmatprep.subr.mxu0 0.0
        %441 = vmatpush2.msra.mxu0 0.0
        %442 = vmatprep.subr.mxu0 0.0
        %443 = vmatpush2.msra.mxu0 0.0
        %444 = vmatprep.subr.mxu0 0.0
        %445 = vmatpush2.msra.mxu0 0.0
        %446 = vmatprep.mubr.f32.mxu0 0.0
        %v447 = vand.u32 %v222, 4294901760
        %v448 = vsub.f32 %v222, %v447
        %449 = vmatmul.mubr.f32.gmra.mxu0 %v448
        %v450 = vpop.f32.mrf.mxu0
        %v451 = vadd.f32 %v377, %v450
        %v452 = vpop.f32.mrf.mxu0
        %453 = vdwg.mxu0
        %454 = vmatprep.subr.mxu0 0.0
        %455 = vmatpush1.msra.mxu0 0.0
        %456 = vmatprep.subr.mxu0 0.0
        %457 = vmatpush1.msra.mxu0 0.0
        %458 = vmatprep.subr.mxu0 0.0
        %459 = vmatpush1.msra.mxu0 0.0
        %460 = vmatprep.subr.mxu0 0.0
        %461 = vmatpush1.msra.mxu0 0.0
        %462 = vmatprep.subr.mxu0 0.0
        %463 = vmatpush1.msra.mxu0 0.0
        %464 = vmatprep.subr.mxu0 0.0
        %465 = vmatpush1.msra.mxu0 0.0
        %466 = vmatprep.subr.mxu0 0.0
        %467 = vmatpush1.msra.mxu0 0.0
        %468 = vmatprep.subr.mxu0 0.0
        %469 = vmatpush1.msra.mxu0 0.0
        %470 = vmatprep.subr.mxu0 0.0
        %471 = vmatpush1.msra.mxu0 0.0
        %472 = vmatprep.subr.mxu0 0.0
        %473 = vmatpush1.msra.mxu0 0.0
        %474 = vmatprep.subr.mxu0 0.0
        %475 = vmatpush1.msra.mxu0 0.0
        %476 = vmatprep.subr.mxu0 0.0
        %477 = vmatpush1.msra.mxu0 0.0
        %478 = vmatprep.subr.mxu0 0.0
        %479 = vmatpush1.msra.mxu0 0.0
        %480 = vmatprep.subr.mxu0 0.0
        %481 = vmatpush1.msra.mxu0 0.0
        %482 = vmatprep.subr.mxu0 0.0
        %483 = vmatpush1.msra.mxu0 0.0
        %484 = vmatprep.subr.mxu0 0.0
        %v485 = vand.u32 %v226, 4294901760
        %486 = vmatpush1.msra.mxu0 %v485
        %487 = vmatprep.subr.mxu0 0.0
        %488 = vmatpush2.msra.mxu0 0.0
        %489 = vmatprep.subr.mxu0 0.0
        %490 = vmatpush2.msra.mxu0 0.0
        %491 = vmatprep.subr.mxu0 0.0
        %492 = vmatpush2.msra.mxu0 0.0
        %493 = vmatprep.subr.mxu0 0.0
        %494 = vmatpush2.msra.mxu0 0.0
        %495 = vmatprep.subr.mxu0 0.0
        %496 = vmatpush2.msra.mxu0 0.0
        %497 = vmatprep.subr.mxu0 0.0
        %498 = vmatpush2.msra.mxu0 0.0
        %499 = vmatprep.subr.mxu0 0.0
        %500 = vmatpush2.msra.mxu0 0.0
        %501 = vmatprep.subr.mxu0 0.0
        %502 = vmatpush2.msra.mxu0 0.0
        %503 = vmatprep.subr.mxu0 0.0
        %504 = vmatpush2.msra.mxu0 0.0
        %505 = vmatprep.subr.mxu0 0.0
        %506 = vmatpush2.msra.mxu0 0.0
        %507 = vmatprep.subr.mxu0 0.0
        %508 = vmatpush2.msra.mxu0 0.0
        %509 = vmatprep.subr.mxu0 0.0
        %510 = vmatpush2.msra.mxu0 0.0
        %511 = vmatprep.subr.mxu0 0.0
        %512 = vmatpush2.msra.mxu0 0.0
        %513 = vmatprep.subr.mxu0 0.0
        %514 = vmatpush2.msra.mxu0 0.0
        %515 = vmatprep.subr.mxu0 0.0
        %516 = vmatpush2.msra.mxu0 0.0
        %517 = vmatprep.subr.mxu0 0.0
        %518 = vmatpush2.msra.mxu0 0.0
        %519 = vmatprep.mubr.f32.mxu0 0.0
        %v520 = vand.u32 %v222, 4294901760
        %v521 = vsub.f32 %v222, %v520
        %v522 = vand.u32 %v521, 4294901760
        %523 = vmatmul.mubr.f32.gmra.mxu0 %v522
        %v524 = vpop.f32.mrf.mxu0
        %v525 = vadd.f32 %v451, %v524
        %v526 = vpop.f32.mrf.mxu0
        %527 = vdwg.mxu0
        %528 = vmatprep.subr.mxu0 0.0
        %529 = vmatpush1.msra.mxu0 0.0
        %530 = vmatprep.subr.mxu0 0.0
        %531 = vmatpush1.msra.mxu0 0.0
        %532 = vmatprep.subr.mxu0 0.0
        %533 = vmatpush1.msra.mxu0 0.0
        %534 = vmatprep.subr.mxu0 0.0
        %535 = vmatpush1.msra.mxu0 0.0
        %536 = vmatprep.subr.mxu0 0.0
        %537 = vmatpush1.msra.mxu0 0.0
        %538 = vmatprep.subr.mxu0 0.0
        %539 = vmatpush1.msra.mxu0 0.0
        %540 = vmatprep.subr.mxu0 0.0
        %541 = vmatpush1.msra.mxu0 0.0
        %542 = vmatprep.subr.mxu0 0.0
        %543 = vmatpush1.msra.mxu0 0.0
        %544 = vmatprep.subr.mxu0 0.0
        %545 = vmatpush1.msra.mxu0 0.0
        %546 = vmatprep.subr.mxu0 0.0
        %547 = vmatpush1.msra.mxu0 0.0
        %548 = vmatprep.subr.mxu0 0.0
        %549 = vmatpush1.msra.mxu0 0.0
        %550 = vmatprep.subr.mxu0 0.0
        %551 = vmatpush1.msra.mxu0 0.0
        %552 = vmatprep.subr.mxu0 0.0
        %553 = vmatpush1.msra.mxu0 0.0
        %554 = vmatprep.subr.mxu0 0.0
        %555 = vmatpush1.msra.mxu0 0.0
        %556 = vmatprep.subr.mxu0 0.0
        %557 = vmatpush1.msra.mxu0 0.0
        %558 = vmatprep.subr.mxu0 0.0
        %v559 = vand.u32 %v226, 4294901760
        %v560 = vsub.f32 %v226, %v559
        %v561 = vand.u32 %v560, 4294901760
        %562 = vmatpush1.msra.mxu0 %v561
        %563 = vmatprep.subr.mxu0 0.0
        %564 = vmatpush2.msra.mxu0 0.0
        %565 = vmatprep.subr.mxu0 0.0
        %566 = vmatpush2.msra.mxu0 0.0
        %567 = vmatprep.subr.mxu0 0.0
        %568 = vmatpush2.msra.mxu0 0.0
        %569 = vmatprep.subr.mxu0 0.0
        %570 = vmatpush2.msra.mxu0 0.0
        %571 = vmatprep.subr.mxu0 0.0
        %572 = vmatpush2.msra.mxu0 0.0
        %573 = vmatprep.subr.mxu0 0.0
        %574 = vmatpush2.msra.mxu0 0.0
        %575 = vmatprep.subr.mxu0 0.0
        %576 = vmatpush2.msra.mxu0 0.0
        %577 = vmatprep.subr.mxu0 0.0
        %578 = vmatpush2.msra.mxu0 0.0
        %579 = vmatprep.subr.mxu0 0.0
        %580 = vmatpush2.msra.mxu0 0.0
        %581 = vmatprep.subr.mxu0 0.0
        %582 = vmatpush2.msra.mxu0 0.0
        %583 = vmatprep.subr.mxu0 0.0
        %584 = vmatpush2.msra.mxu0 0.0
        %585 = vmatprep.subr.mxu0 0.0
        %586 = vmatpush2.msra.mxu0 0.0
        %587 = vmatprep.subr.mxu0 0.0
        %588 = vmatpush2.msra.mxu0 0.0
        %589 = vmatprep.subr.mxu0 0.0
        %590 = vmatpush2.msra.mxu0 0.0
        %591 = vmatprep.subr.mxu0 0.0
        %592 = vmatpush2.msra.mxu0 0.0
        %593 = vmatprep.subr.mxu0 0.0
        %594 = vmatpush2.msra.mxu0 0.0
        %595 = vmatprep.mubr.f32.mxu0 0.0
        %v596 = vand.u32 %v222, 4294901760
        %597 = vmatmul.mubr.f32.gmra.mxu0 %v596
        %v598 = vpop.f32.mrf.mxu0
        %v599 = vadd.f32 %v525, %v598
        %v600 = vpop.f32.mrf.mxu0
        %601 = vdwg.mxu0
        %602 = vmatprep.subr.mxu0 0.0
        %603 = vmatpush1.msra.mxu0 0.0
        %604 = vmatprep.subr.mxu0 0.0
        %605 = vmatpush1.msra.mxu0 0.0
        %606 = vmatprep.subr.mxu0 0.0
        %607 = vmatpush1.msra.mxu0 0.0
        %608 = vmatprep.subr.mxu0 0.0
        %609 = vmatpush1.msra.mxu0 0.0
        %610 = vmatprep.subr.mxu0 0.0
        %611 = vmatpush1.msra.mxu0 0.0
        %612 = vmatprep.subr.mxu0 0.0
        %613 = vmatpush1.msra.mxu0 0.0
        %614 = vmatprep.subr.mxu0 0.0
        %615 = vmatpush1.msra.mxu0 0.0
        %616 = vmatprep.subr.mxu0 0.0
        %617 = vmatpush1.msra.mxu0 0.0
        %618 = vmatprep.subr.mxu0 0.0
        %619 = vmatpush1.msra.mxu0 0.0
        %620 = vmatprep.subr.mxu0 0.0
        %621 = vmatpush1.msra.mxu0 0.0
        %622 = vmatprep.subr.mxu0 0.0
        %623 = vmatpush1.msra.mxu0 0.0
        %624 = vmatprep.subr.mxu0 0.0
        %625 = vmatpush1.msra.mxu0 0.0
        %626 = vmatprep.subr.mxu0 0.0
        %627 = vmatpush1.msra.mxu0 0.0
        %628 = vmatprep.subr.mxu0 0.0
        %629 = vmatpush1.msra.mxu0 0.0
        %630 = vmatprep.subr.mxu0 0.0
        %631 = vmatpush1.msra.mxu0 0.0
        %632 = vmatprep.subr.mxu0 0.0
        %v633 = vand.u32 %v226, 4294901760
        %634 = vmatpush1.msra.mxu0 %v633
        %635 = vmatprep.subr.mxu0 0.0
        %636 = vmatpush2.msra.mxu0 0.0
        %637 = vmatprep.subr.mxu0 0.0
        %638 = vmatpush2.msra.mxu0 0.0
        %639 = vmatprep.subr.mxu0 0.0
        %640 = vmatpush2.msra.mxu0 0.0
        %641 = vmatprep.subr.mxu0 0.0
        %642 = vmatpush2.msra.mxu0 0.0
        %643 = vmatprep.subr.mxu0 0.0
        %644 = vmatpush2.msra.mxu0 0.0
        %645 = vmatprep.subr.mxu0 0.0
        %646 = vmatpush2.msra.mxu0 0.0
        %647 = vmatprep.subr.mxu0 0.0
        %648 = vmatpush2.msra.mxu0 0.0
        %649 = vmatprep.subr.mxu0 0.0
        %650 = vmatpush2.msra.mxu0 0.0
        %651 = vmatprep.subr.mxu0 0.0
        %652 = vmatpush2.msra.mxu0 0.0
        %653 = vmatprep.subr.mxu0 0.0
        %654 = vmatpush2.msra.mxu0 0.0
        %655 = vmatprep.subr.mxu0 0.0
        %656 = vmatpush2.msra.mxu0 0.0
        %657 = vmatprep.subr.mxu0 0.0
        %658 = vmatpush2.msra.mxu0 0.0
        %659 = vmatprep.subr.mxu0 0.0
        %660 = vmatpush2.msra.mxu0 0.0
        %661 = vmatprep.subr.mxu0 0.0
        %662 = vmatpush2.msra.mxu0 0.0
        %663 = vmatprep.subr.mxu0 0.0
        %664 = vmatpush2.msra.mxu0 0.0
        %665 = vmatprep.subr.mxu0 0.0
        %666 = vmatpush2.msra.mxu0 0.0
        %667 = vmatprep.mubr.f32.mxu0 0.0
        %v668 = vand.u32 %v222, 4294901760
        %669 = vmatmul.mubr.f32.gmra.mxu0 %v668
        %v670 = vpop.f32.mrf.mxu0
        %v671 = vadd.f32 %v599, %v670
        %v672 = vpop.f32.mrf.mxu0
        %673 = vdwg.mxu0
        %674 = vst [vmem:[%s211] sm:$0x7] %v671
        %p675 = scmp.lt.s32.totalorder %s21, 1
        %s676 = scalar_select %p675, %s21, 1
        %p677 = scmp.lt.s32.totalorder %s22, 1
        %s678 = scalar_select %p677, %s22, 1
        %s679 = smul.addr %s676, 2
        %s680 = sadd.s32 %s678, %s679
        %s681 = smul.addr %s680, 4
        %s682 = scalar_lea.vmem %s3, %s681
        // Predicated region
        $region37: #{tpu_custom_call.1} parent=31 // pred_check
          %p683 = pneg %p119
        $region38: #{tpu_custom_call.1} parent=31 // pred_check_branch
          %685 = sbr.rel (%p683) target = $region40
        $region39: #{tpu_custom_call.1} parent=31 // pred_region
          _
        $region40: #{tpu_custom_call.1} parent=31 // pred_fallthru
          _
      $region32: #{tpu_custom_call.1} parent=5 // pred_fallthru
        _
      %p686 = scmp.le.s32.totalorder 2, %s12
      // Predicated region
      $region41: #{tpu_custom_call.1} parent=5 // pred_check
        %p687 = pneg %p686
      $region42: #{tpu_custom_call.1} parent=5 // pred_check_branch
        %689 = sbr.rel (%p687) target = $region44
      $region43: #{tpu_custom_call.1} parent=5 // pred_region
        %s690 = ssub.s32 %s12, 2
        // Predicated region
        $region45: #{tpu_custom_call.1} parent=43 // pred_check
          %p691 = pneg %p125
        $region46: #{tpu_custom_call.1} parent=43 // pred_check_branch
          %693 = sbr.rel (%p691) target = $region48
        $region47: #{tpu_custom_call.1} parent=43 // pred_region
          %p694 = scmp.lt.s32.totalorder %s23, 1
          %s695 = scalar_select %p694, %s23, 1
          %p696 = scmp.lt.s32.totalorder %s24, 1
          %s697 = scalar_select %p696, %s24, 1
          %s698 = smul.addr %s695, 2
          %s699 = sadd.s32 %s697, %s698
          %s700 = smul.addr %s699, 4
          %s701 = scalar_lea.vmem %s3, %s700
        $region48: #{tpu_custom_call.1} parent=43 // pred_fallthru
          _
      $region44: #{tpu_custom_call.1} parent=5 // pred_fallthru
        _
    $region6: #{tpu_custom_call.1} parent=1 // loop_footer
      %s16 = sadd.s32 1, %s12
    $region7: #{tpu_custom_call.1} parent=1 // loop_footer_branch
      %11 = sbr.rel target = $region3
    $region8: #{tpu_custom_call.1} parent=1 // loop_exit
      _
    %702 = vsyncpa [#allocation3], 1
    %s703 = scalar_lea.sflag [#allocation3], 1
    %704 = vsyncpa %s703, 1

</llo_original>
